<compile_context>
chip_gen: v7x
topology: tpu7x:2x2x1
jax: 0.10.0
libtpu: 0.0.40
codegen_flags: <defaults>
</compile_context>

<pallas_src>
import functools

import jax
import jax.numpy as jnp
from jax.experimental import pallas as pl
from jax.experimental.pallas import tpu as pltpu

GAMMA = 2.0   # compile-time constant: implemented as x*x, not pow.
ALPHA = 0.25  # NOTE: unused in the reference forward() — kept only for parity.
LANE = 128
SUBLANE = 8
DEFAULT_BLOCK_ROWS = 2048   # (2048, 128) f32 block = 1 MiB per input per buffer.
DEFAULT_NUM_CHUNKS = 2      # leading "parallel" grid axis (2 TCs on v7x).


def _round_up(x, m):
    return (x + m - 1) // m * m


def _focal_sums_kernel(n_ref, pred_ref, target_ref, acc_ref, *,
                       block_rows, blocks_per_chunk):
    """acc_ref: (3, 8, 128) per-chunk partial sums [pos_loss, neg_loss, num_pos]."""
    c = pl.program_id(0)   # chunk ("parallel")
    i = pl.program_id(1)   # block within chunk ("arbitrary" / reduction axis)

    @pl.when(i == 0)
    def _init():
        acc_ref[...] = jnp.zeros_like(acc_ref)

    p = pred_ref[...].astype(jnp.float32)
    t = target_ref[...].astype(jnp.float32)

    # Mask everything past the real element count n: the ragged tail, padded
    # rows and duplicated/clamped trailing blocks. Uses the *logical* block
    # position (program ids), so stale VMEM data in partial blocks cannot leak.
    block_idx = c * blocks_per_chunk + i
    row_ids = jax.lax.broadcasted_iota(jnp.int32, (block_rows, LANE), 0)
    lane_ids = jax.lax.broadcasted_iota(jnp.int32, (block_rows, LANE), 1)
    elem_ids = (row_ids + block_idx * block_rows) * LANE + lane_ids
    valid = elem_ids < n_ref[0]

    pos_mask = jnp.logical_and(valid, t == 1.0)
    neg_mask = jnp.logical_and(valid, t < 1.0)

    one_m_p = 1.0 - p
    pos_term = -(one_m_p * one_m_p) * jnp.log(p + 1e-08)
    neg_term = -(p * p) * jnp.log(1.0 - p + 1e-08)

    # select (not multiply-by-mask) so NaN/Inf from masked-off data never leaks.
    pos_c = jnp.where(pos_mask, pos_term, 0.0)
    neg_c = jnp.where(neg_mask, neg_term, 0.0)
    np_c = jnp.where(pos_mask, 1.0, 0.0)

    # Fold (block_rows, 128) -> (8, 128): pure VPU adds, no cross-lane traffic.
    def fold(x):
        return jnp.sum(x.reshape(block_rows // SUBLANE, SUBLANE, LANE), axis=0)

    acc_ref[0] += fold(pos_c)
    acc_ref[1] += fold(neg_c)
    acc_ref[2] += fold(np_c)


def focal_loss(pred, target, *, max_block_rows=DEFAULT_BLOCK_ROWS,
               num_chunks=DEFAULT_NUM_CHUNKS):
    """pred, target: same shape (e.g. NCHW). Returns scalar f32 loss."""
    assert pred.shape == target.shape
    assert max_block_rows % SUBLANE == 0
    n = int(pred.size)

    flat_p = pred.reshape(-1)   # keep input dtype (bf16 halves HBM traffic)
    flat_t = target.reshape(-1)

    # Lane-dense (rows, 128) slab. Pad only when n isn't already a multiple of
    # the (8,128) tile; pad values are irrelevant (masked in-kernel by n).
    tile = SUBLANE * LANE
    n_pad = _round_up(n, tile)
    if n_pad != n:
        flat_p = jnp.pad(flat_p, (0, n_pad - n))
        flat_t = jnp.pad(flat_t, (0, n_pad - n))
    rows = n_pad // LANE
    p2 = flat_p.reshape(rows, LANE)
    t2 = flat_t.reshape(rows, LANE)

    block_rows = min(max_block_rows, rows)          # both multiples of 8
    total_blocks = pl.cdiv(rows, block_rows)
    num_chunks = max(1, min(num_chunks, total_blocks))
    blocks_per_chunk = pl.cdiv(total_blocks, num_chunks)

    n_smem = jnp.array([n], dtype=jnp.int32)        # scalar-prefetch operand

    def in_map(c, i, n_ref):
        # Clamp so over-hanging grid steps re-read a valid block; their
        # contribution is masked to zero inside the kernel.
        return (jnp.minimum(c * blocks_per_chunk + i, total_blocks - 1), 0)

    kernel = functools.partial(_focal_sums_kernel, block_rows=block_rows,
                               blocks_per_chunk=blocks_per_chunk)

    bytes_per_elem = (jnp.dtype(pred.dtype).itemsize
                      + jnp.dtype(target.dtype).itemsize)

    partials = pl.pallas_call(
        kernel,
        out_shape=jax.ShapeDtypeStruct((num_chunks * 3, SUBLANE, LANE),
                                       jnp.float32),
        grid_spec=pltpu.PrefetchScalarGridSpec(
            num_scalar_prefetch=1,
            grid=(num_chunks, blocks_per_chunk),
            in_specs=[
                pl.BlockSpec((block_rows, LANE), in_map),
                pl.BlockSpec((block_rows, LANE), in_map),
            ],
            # Output block index depends only on the chunk -> stays resident in
            # VMEM across the inner ("arbitrary") axis and acts as accumulator.
            out_specs=pl.BlockSpec((3, SUBLANE, LANE),
                                   lambda c, i, n_ref: (c, 0, 0)),
        ),
        compiler_params=pltpu.CompilerParams(
            dimension_semantics=("parallel", "arbitrary"),
            vmem_limit_bytes=32 * 1024 * 1024,
        ),
        cost_estimate=pl.CostEstimate(
            flops=12 * n, transcendentals=2 * n,
            bytes_accessed=n * bytes_per_elem),
    )(n_smem, p2, t2)

    sums = partials.reshape(num_chunks, 3, SUBLANE, LANE)
    pos_sum = jnp.sum(sums[:, 0])
    neg_sum = jnp.sum(sums[:, 1])
    num_pos = jnp.sum(sums[:, 2])
    return jnp.where(num_pos == 0.0, neg_sum, (pos_sum + neg_sum) / num_pos)


def focal_loss_ref(pred, target):
    """Pure-JAX reference mirroring the PyTorch module exactly."""
    pred = pred.astype(jnp.float32)
    target = target.astype(jnp.float32)
    pos_inds = (target == 1.0).astype(jnp.float32)
    neg_inds = (target < 1.0).astype(jnp.float32)
    pos_loss = -((1.0 - pred) ** GAMMA) * jnp.log(pred + 1e-08) * pos_inds
    neg_loss = -(pred ** GAMMA) * jnp.log(1.0 - pred + 1e-08) * neg_inds
    num_pos = pos_inds.sum()
    pos_loss = pos_loss.sum()
    neg_loss = neg_loss.sum()
    return jnp.where(num_pos == 0.0, neg_loss, (pos_loss + neg_loss) / num_pos)


def _make_inputs(key, shape, peak_thresh):
    k1, k2, k3 = jax.random.split(key, 3)
    pred = jax.nn.sigmoid(jax.random.normal(k1, shape, dtype=jnp.float32))
    soft = 0.9 * jax.random.uniform(k2, shape, dtype=jnp.float32)
    peak = jax.random.uniform(k3, shape) > peak_thresh
    target = jnp.where(peak, 1.0, soft)
    return pred, target


if __name__ == "__main__":
    # Check 1: NCHW heatmap whose size is a multiple of the (8,128) tile
    # (batch=2, channels=4, spatial=16x16) -> no pad, single block.
    pred, target = _make_inputs(jax.random.PRNGKey(0), (2, 4, 16, 16), 0.95)
    out = jax.block_until_ready(focal_loss(pred, target))
    ref = jax.block_until_ready(focal_loss_ref(pred, target))
    assert jnp.allclose(out, ref, rtol=1e-5, atol=1e-5), (out, ref)

    # Check 2: ragged size (2*3*7*13 = 546 elems) -> exercises in-kernel tail mask.
    pred2, target2 = _make_inputs(jax.random.PRNGKey(1), (2, 3, 7, 13), 0.9)
    out2 = jax.block_until_ready(focal_loss(pred2, target2))
    ref2 = jax.block_until_ready(focal_loss_ref(pred2, target2))
    assert jnp.allclose(out2, ref2, rtol=1e-5, atol=1e-5), (out2, ref2)

    # Check 3: force the multi-block + 2-chunk ("parallel") path at small size.
    pred3, target3 = _make_inputs(jax.random.PRNGKey(2), (2, 4, 32, 32), 0.97)
    out3 = jax.block_until_ready(
        focal_loss(pred3, target3, max_block_rows=8, num_chunks=2))
    ref3 = jax.block_until_ready(focal_loss_ref(pred3, target3))
    assert jnp.allclose(out3, ref3, rtol=1e-5, atol=1e-5), (out3, ref3)

    print("KERNEL_OK")
</pallas_src>

<mosaic_0001>
module attributes {stable_mosaic.version = 11 : i64} {
  func.func @_focal_sums_kernel(%arg0: i32, %arg1: i32, %arg2: memref<1xi32, #tpu.memory_space<smem>>, %arg3: memref<16x128xf32, #tpu.memory_space<vmem>>, %arg4: memref<16x128xf32, #tpu.memory_space<vmem>>, %arg5: memref<3x8x128xf32, #tpu.memory_space<vmem>>) attributes {dimension_semantics = [#tpu.dimension_semantics<parallel>, #tpu.dimension_semantics<arbitrary>], iteration_bounds = array<i64: 1, 1>, scalar_prefetch = 1 : i64, scratch_operands = 0 : i64, tpu.core_type = #tpu.core_type<tc>, window_params = [{transform_indices = @transform_0, window_bounds = array<i64: 16, 128>}, {transform_indices = @transform_1, window_bounds = array<i64: 16, 128>}, {transform_indices = @transform_2, window_bounds = array<i64: 3, 8, 128>}]} {
    %c0_i32 = arith.constant 0 : i32
    %0 = arith.cmpi eq, %arg1, %c0_i32 : i32
    %1 = arith.extui %0 : i1 to i32
    %c0_i32_0 = arith.constant 0 : i32
    %2 = arith.cmpi ne, %1, %c0_i32_0 : i32
    scf.if %2 {
      %cst_35 = arith.constant 0.000000e+00 : f32
      %73 = vector.broadcast %cst_35 : f32 to vector<3x8x128xf32>
      %c0_36 = arith.constant 0 : index
      %c0_37 = arith.constant 0 : index
      %c0_38 = arith.constant 0 : index
      %74 = vector.load %arg5[%c0_36, %c0_37, %c0_38] : memref<3x8x128xf32, #tpu.memory_space<vmem>>, vector<3x8x128xf32>
      tpu.vector_store %arg5[%c0_36, %c0_37, %c0_38], %73 {strides = array<i32>} : memref<3x8x128xf32, #tpu.memory_space<vmem>>, vector<3x8x128xf32>,
    } else {
    }
    %c0 = arith.constant 0 : index
    %c0_1 = arith.constant 0 : index
    %3 = vector.load %arg3[%c0, %c0_1] : memref<16x128xf32, #tpu.memory_space<vmem>>, vector<16x128xf32>
    %c0_2 = arith.constant 0 : index
    %c0_3 = arith.constant 0 : index
    %4 = vector.load %arg4[%c0_2, %c0_3] : memref<16x128xf32, #tpu.memory_space<vmem>>, vector<16x128xf32>
    %c1_i32 = arith.constant 1 : i32
    %5 = arith.muli %arg0, %c1_i32 : i32
    %6 = arith.addi %5, %arg1 : i32
    %7 = tpu.iota {dimensions = array<i32: 0>} : vector<16x128xi32>
    %8 = tpu.iota {dimensions = array<i32: 1>} : vector<16x128xi32>
    %c16_i32 = arith.constant 16 : i32
    %9 = arith.muli %6, %c16_i32 : i32
    %10 = vector.broadcast %9 : i32 to vector<16x128xi32>
    %11 = arith.addi %7, %10 : vector<16x128xi32>
    %c128_i32 = arith.constant 128 : i32
    %12 = vector.broadcast %c128_i32 : i32 to vector<16x128xi32>
    %13 = arith.muli %11, %12 : vector<16x128xi32>
    %14 = arith.addi %13, %8 : vector<16x128xi32>
    %c0_4 = arith.constant 0 : index
    %15 = memref.load %arg2[%c0_4] : memref<1xi32, #tpu.memory_space<smem>>
    %16 = vector.broadcast %15 : i32 to vector<16x128xi32>
    %17 = arith.cmpi slt, %14, %16 : vector<16x128xi32>
    %cst = arith.constant 1.000000e+00 : f32
    %18 = vector.broadcast %cst : f32 to vector<16x128xf32>
    %19 = arith.cmpf oeq, %4, %18 : vector<16x128xf32>
    %20 = arith.andi %17, %19 : vector<16x128xi1>
    %cst_5 = arith.constant 1.000000e+00 : f32
    %21 = vector.broadcast %cst_5 : f32 to vector<16x128xf32>
    %22 = arith.cmpf olt, %4, %21 : vector<16x128xf32>
    %23 = arith.andi %17, %22 : vector<16x128xi1>
    %cst_6 = arith.constant 1.000000e+00 : f32
    %24 = vector.broadcast %cst_6 : f32 to vector<16x128xf32>
    %25 = arith.subf %24, %3 : vector<16x128xf32>
    %26 = arith.mulf %25, %25 : vector<16x128xf32>
    %cst_7 = arith.constant 0.000000e+00 : f32
    %27 = vector.broadcast %cst_7 : f32 to vector<16x128xf32>
    %28 = arith.subf %27, %26 : vector<16x128xf32>
    %cst_8 = arith.constant 9.99999993E-9 : f32
    %29 = vector.broadcast %cst_8 : f32 to vector<16x128xf32>
    %30 = arith.addf %3, %29 : vector<16x128xf32>
    %31 = math.log %30 : vector<16x128xf32>
    %32 = arith.mulf %28, %31 : vector<16x128xf32>
    %33 = arith.mulf %3, %3 : vector<16x128xf32>
    %cst_9 = arith.constant 0.000000e+00 : f32
    %34 = vector.broadcast %cst_9 : f32 to vector<16x128xf32>
    %35 = arith.subf %34, %33 : vector<16x128xf32>
    %cst_10 = arith.constant 1.000000e+00 : f32
    %36 = vector.broadcast %cst_10 : f32 to vector<16x128xf32>
    %37 = arith.subf %36, %3 : vector<16x128xf32>
    %cst_11 = arith.constant 9.99999993E-9 : f32
    %38 = vector.broadcast %cst_11 : f32 to vector<16x128xf32>
    %39 = arith.addf %37, %38 : vector<16x128xf32>
    %40 = math.log %39 : vector<16x128xf32>
    %41 = arith.mulf %35, %40 : vector<16x128xf32>
    %cst_12 = arith.constant 0.000000e+00 : f32
    %42 = vector.broadcast %cst_12 : f32 to vector<16x128xf32>
    %43 = arith.select %20, %32, %42 : vector<16x128xi1>, vector<16x128xf32>
    %cst_13 = arith.constant 0.000000e+00 : f32
    %44 = vector.broadcast %cst_13 : f32 to vector<16x128xf32>
    %45 = arith.select %23, %41, %44 : vector<16x128xi1>, vector<16x128xf32>
    %cst_14 = arith.constant 1.000000e+00 : f32
    %cst_15 = arith.constant 0.000000e+00 : f32
    %46 = vector.broadcast %cst_14 : f32 to vector<16x128xf32>
    %47 = vector.broadcast %cst_15 : f32 to vector<16x128xf32>
    %48 = arith.select %20, %46, %47 : vector<16x128xi1>, vector<16x128xf32>
    %c0_16 = arith.constant 0 : index
    %c0_17 = arith.constant 0 : index
    %c0_18 = arith.constant 0 : index
    %49 = vector.load %arg5[%c0_16, %c0_17, %c0_18] : memref<3x8x128xf32, #tpu.memory_space<vmem>>, vector<1x8x128xf32>
    %50 = vector.shape_cast %49 : vector<1x8x128xf32> to vector<8x128xf32>
    %51 = vector.shape_cast %43 : vector<16x128xf32> to vector<2x8x128xf32>
    %cst_19 = arith.constant dense<0.000000e+00> : vector<8x128xf32>
    %52 = vector.multi_reduction <add>, %51, %cst_19 [0] : vector<2x8x128xf32> to vector<8x128xf32>
    %53 = arith.addf %50, %52 : vector<8x128xf32>
    %c0_20 = arith.constant 0 : index
    %c0_21 = arith.constant 0 : index
    %c0_22 = arith.constant 0 : index
    %54 = vector.load %arg5[%c0_20, %c0_21, %c0_22] : memref<3x8x128xf32, #tpu.memory_space<vmem>>, vector<1x8x128xf32>
    %55 = vector.shape_cast %54 : vector<1x8x128xf32> to vector<8x128xf32>
    %56 = vector.shape_cast %53 : vector<8x128xf32> to vector<1x8x128xf32>
    tpu.vector_store %arg5[%c0_20, %c0_21, %c0_22], %56 {strides = array<i32>} : memref<3x8x128xf32, #tpu.memory_space<vmem>>, vector<1x8x128xf32>,
    %c1 = arith.constant 1 : index
    %c0_23 = arith.constant 0 : index
    %c0_24 = arith.constant 0 : index
    %57 = vector.load %arg5[%c1, %c0_23, %c0_24] : memref<3x8x128xf32, #tpu.memory_space<vmem>>, vector<1x8x128xf32>
    %58 = vector.shape_cast %57 : vector<1x8x128xf32> to vector<8x128xf32>
    %59 = vector.shape_cast %45 : vector<16x128xf32> to vector<2x8x128xf32>
    %cst_25 = arith.constant dense<0.000000e+00> : vector<8x128xf32>
    %60 = vector.multi_reduction <add>, %59, %cst_25 [0] : vector<2x8x128xf32> to vector<8x128xf32>
    %61 = arith.addf %58, %60 : vector<8x128xf32>
    %c1_26 = arith.constant 1 : index
    %c0_27 = arith.constant 0 : index
    %c0_28 = arith.constant 0 : index
    %62 = vector.load %arg5[%c1_26, %c0_27, %c0_28] : memref<3x8x128xf32, #tpu.memory_space<vmem>>, vector<1x8x128xf32>
    %63 = vector.shape_cast %62 : vector<1x8x128xf32> to vector<8x128xf32>
    %64 = vector.shape_cast %61 : vector<8x128xf32> to vector<1x8x128xf32>
    tpu.vector_store %arg5[%c1_26, %c0_27, %c0_28], %64 {strides = array<i32>} : memref<3x8x128xf32, #tpu.memory_space<vmem>>, vector<1x8x128xf32>,
    %c2 = arith.constant 2 : index
    %c0_29 = arith.constant 0 : index
    %c0_30 = arith.constant 0 : index
    %65 = vector.load %arg5[%c2, %c0_29, %c0_30] : memref<3x8x128xf32, #tpu.memory_space<vmem>>, vector<1x8x128xf32>
    %66 = vector.shape_cast %65 : vector<1x8x128xf32> to vector<8x128xf32>
    %67 = vector.shape_cast %48 : vector<16x128xf32> to vector<2x8x128xf32>
    %cst_31 = arith.constant dense<0.000000e+00> : vector<8x128xf32>
    %68 = vector.multi_reduction <add>, %67, %cst_31 [0] : vector<2x8x128xf32> to vector<8x128xf32>
    %69 = arith.addf %66, %68 : vector<8x128xf32>
    %c2_32 = arith.constant 2 : index
    %c0_33 = arith.constant 0 : index
    %c0_34 = arith.constant 0 : index
    %70 = vector.load %arg5[%c2_32, %c0_33, %c0_34] : memref<3x8x128xf32, #tpu.memory_space<vmem>>, vector<1x8x128xf32>
    %71 = vector.shape_cast %70 : vector<1x8x128xf32> to vector<8x128xf32>
    %72 = vector.shape_cast %69 : vector<8x128xf32> to vector<1x8x128xf32>
    tpu.vector_store %arg5[%c2_32, %c0_33, %c0_34], %72 {strides = array<i32>} : memref<3x8x128xf32, #tpu.memory_space<vmem>>, vector<1x8x128xf32>,
    return
  }
  func.func @transform_0(%arg0: i32, %arg1: i32, %arg2: memref<1xi32, #tpu.memory_space<smem>>) -> (i32, i32) {
    %c1_i32 = arith.constant 1 : i32
    %0 = arith.muli %arg0, %c1_i32 : i32
    %1 = arith.addi %0, %arg1 : i32
    %c0_i32 = arith.constant 0 : i32
    %2 = arith.minsi %1, %c0_i32 : i32
    %c0_i32_0 = arith.constant 0 : i32
    %c0_i32_1 = arith.constant 0 : i32
    return %2, %c0_i32_0 : i32, i32
  }
  func.func @transform_1(%arg0: i32, %arg1: i32, %arg2: memref<1xi32, #tpu.memory_space<smem>>) -> (i32, i32) {
    %c1_i32 = arith.constant 1 : i32
    %0 = arith.muli %arg0, %c1_i32 : i32
    %1 = arith.addi %0, %arg1 : i32
    %c0_i32 = arith.constant 0 : i32
    %2 = arith.minsi %1, %c0_i32 : i32
    %c0_i32_0 = arith.constant 0 : i32
    %c0_i32_1 = arith.constant 0 : i32
    return %2, %c0_i32_0 : i32, i32
  }
  func.func @transform_2(%arg0: i32, %arg1: i32, %arg2: memref<1xi32, #tpu.memory_space<smem>>) -> (i32, i32, i32) {
    %c0_i32 = arith.constant 0 : i32
    %c0_i32_0 = arith.constant 0 : i32
    %c0_i32_1 = arith.constant 0 : i32
    return %arg0, %c0_i32, %c0_i32_0 : i32, i32, i32
  }
}

</mosaic_0001>

<llo_original>
// kernel: tpu_custom_call.1
$region0: #{tpu_custom_call.1}
  #allocation0 [shape = 'u32[]', space=smem, size = 0x4, offset = 0x4, fixed_abs, tag = 'smem constant byte address 0x4 - core index']
  #allocation1 [shape = 'u32[144,128]{1,0:T(1,128)}', space=vmem, size = 0x12000, scoped, tag = 'internal scratch']
  #allocation2 [shape = 's32[1]{0}', space=sflag, size = 0x4, scoped, tag = 'scoped memory for tpu_custom_call.1']
  #allocation3 [shape = 's32[1]{0:T(128)S(6)}', space=smem, size = 0x200, scoped, tag = 'prefetched SMEM operand 0']
  %s0 = inlined_call_operand.<no memory space> [shape: s32[1], index: 0, kind: input, shape index: {}]
  %s1 = inlined_call_operand.hbm [shape: f32[16,128], index: 1, kind: input, shape index: {}]
  %s2 = inlined_call_operand.hbm [shape: f32[16,128], index: 2, kind: input, shape index: {}]
  %s3 = inlined_call_operand.hbm [shape: f32[3,8,128], index: 3, kind: output, shape index: {}]
  %s4 = sld [smem:[#allocation0]]
  $region30: #{tpu_custom_call.1} parent=0
    _
  %s6 = ssub.s32 1, %s4
  %s7 = scalar_select 0, %s6, %s4
  %8 = sst [smem:[#allocation3]] %s0
  $region1: #{tpu_custom_call.1} parent=0
    #allocation4 [shape = 'u8[8192]{0}', space=vmem, size = 0x2000, scoped, tag = 'input window, operand 1, single buffered']
    #allocation5 [shape = 's32[1]{0}', space=sflag, size = 0x4, scoped, tag = 'scoped memory for tpu_custom_call.1']
    #allocation6 [shape = 's32[1]{0}', space=sflag, size = 0x4, scoped, tag = 'scoped memory for tpu_custom_call.1']
    #allocation7 [shape = 'u8[8192]{0}', space=vmem, size = 0x2000, scoped, tag = 'input window, operand 2, single buffered']
    #allocation8 [shape = 's32[1]{0}', space=sflag, size = 0x4, scoped, tag = 'scoped memory for tpu_custom_call.1']
    #allocation9 [shape = 'u8[12288]{0}', space=vmem, size = 0x3000, scoped, tag = 'output window, operand 0, single buffered']
    %9 = vsyncpa [#allocation5], 0
    %10 = vsyncpa [#allocation8], 0
    %11 = vsyncpa [#allocation6], 0
    // Predicated region
    $region2: #{tpu_custom_call.1} parent=1 // pred_check
      _
    $region3: #{tpu_custom_call.1} parent=1 // pred_check_branch
      %13 = sbr.rel (0) target = $region5
    $region4: #{tpu_custom_call.1} parent=1 // pred_region
      %s14 = sadd.s32 0, 0
      %p15 = scmp.lt.s32.totalorder %s14, 0
      %s16 = scalar_select %p15, %s14, 0
      %s17 = smul.u32 2, %s16
      %s19 = ssub.s32 256, 256
      %20 = vsyncadd [#allocation5], %s19
      %s21 = smul.addr %s17, 128
      %s22 = scalar_lea.hbm %s1, %s21
      %s23 = sshll.u32 [#allocation4], 4
      %s24 = int_to_ptr.vmem [resolvable:$true] %s23
      %29 = dma.hbm_to_vmem [thread:$0]  %s22, 256, %s24, [#allocation5], 128, 128, 8
    $region5: #{tpu_custom_call.1} parent=1 // pred_fallthru
      _
    // Predicated region
    $region6: #{tpu_custom_call.1} parent=1 // pred_check
      _
    $region7: #{tpu_custom_call.1} parent=1 // pred_check_branch
      %31 = sbr.rel (0) target = $region9
    $region8: #{tpu_custom_call.1} parent=1 // pred_region
      %s32 = sadd.s32 0, 0
      %p33 = scmp.lt.s32.totalorder %s32, 0
      %s34 = scalar_select %p33, %s32, 0
      %s35 = smul.u32 2, %s34
      %s37 = ssub.s32 256, 256
      %38 = vsyncadd [#allocation8], %s37
      %s39 = smul.addr %s35, 128
      %s40 = scalar_lea.hbm %s2, %s39
      %s41 = sshll.u32 [#allocation7], 4
      %s42 = int_to_ptr.vmem [resolvable:$true] %s41
      %47 = dma.hbm_to_vmem [thread:$0]  %s40, 256, %s42, [#allocation8], 128, 128, 8
    $region9: #{tpu_custom_call.1} parent=1 // pred_fallthru
      _
    // Predicated region
    $region10: #{tpu_custom_call.1} parent=1 // pred_check
      _
    $region11: #{tpu_custom_call.1} parent=1 // pred_check_branch
      %49 = sbr.rel (0) target = $region13
    $region12: #{tpu_custom_call.1} parent=1 // pred_region
      %50 = dma.done [#allocation5], 256
    $region13: #{tpu_custom_call.1} parent=1 // pred_fallthru
      _
    // Predicated region
    $region14: #{tpu_custom_call.1} parent=1 // pred_check
      _
    $region15: #{tpu_custom_call.1} parent=1 // pred_check_branch
      %52 = sbr.rel (0) target = $region17
    $region16: #{tpu_custom_call.1} parent=1 // pred_region
      %53 = dma.done [#allocation8], 256
    $region17: #{tpu_custom_call.1} parent=1 // pred_fallthru
      _
    %s54 = sadd.s32 0, 0
    %p55 = scmp.lt.s32.totalorder %s54, 0
    %s56 = scalar_select %p55, %s54, 0
    %s57 = smul.u32 2, %s56
    %s58 = sadd.s32 0, 0
    %p59 = scmp.lt.s32.totalorder %s58, 0
    %s60 = scalar_select %p59, %s58, 0
    %s61 = smul.u32 2, %s60
    %p62 = scmp.eq.s32.totalorder 0, 0
    // Predicated region
    $region18: #{tpu_custom_call.1} parent=1 // pred_check
      %p63 = pneg %p62
    $region19: #{tpu_custom_call.1} parent=1 // pred_check_branch
      %65 = sbr.rel (%p63) target = $region21
    $region20: #{tpu_custom_call.1} parent=1 // pred_region
      %66 = vst [vmem:[#allocation9] sm:$0xff] 0.0
      %67 = vst [vmem:[#allocation9 + $0x8] sm:$0xff] 0.0
      %68 = vst [vmem:[#allocation9 + $0x10] sm:$0xff] 0.0
    $region21: #{tpu_custom_call.1} parent=1 // pred_fallthru
      _
    %v69 = vld [vmem:[#allocation4] sm:$0xff]
    %v70 = vld [vmem:[#allocation4 + $0x8] sm:$0xff]
    %v71 = vld [vmem:[#allocation7] sm:$0xff]
    %v72 = vld [vmem:[#allocation7 + $0x8] sm:$0xff]
    %s73 = sadd.s32 0, 0
    %v74 = vlaneseq
    %v75 = vshrl.u32 %v74, 7
    %v76 = vadd.s32 %v75, 8
    %v77 = vlaneseq
    %v78 = vand.u32 %v77, 127
    %s79 = smul.u32 %s73, 16
    %v80 = vstv %s79
    %v81 = vadd.s32 %v75, %v80
    %v82 = vadd.s32 %v76, %v80
    %v83 = vmul.u32 %v81, 128
    %v84 = vmul.u32 %v82, 128
    %v85 = vadd.s32 %v83, %v78
    %v86 = vadd.s32 %v84, %v78
    %s87 = sld [smem:[#allocation3]]
    %v88 = vstv %s87
    %vm89 = vcmp.lt.s32.totalorder %v85, %v88
    %vm90 = vcmp.lt.s32.totalorder %v86, %v88
    %vm91 = vcmp.eq.f32.partialorder %v71, 1.0
    %vm92 = vcmp.eq.f32.partialorder %v72, 1.0
    %vm93 = vmand %vm89, %vm91
    %vm94 = vmand %vm90, %vm92
    %vm95 = vcmp.lt.f32.partialorder %v71, 1.0
    %vm96 = vcmp.lt.f32.partialorder %v72, 1.0
    %vm97 = vmand %vm89, %vm95
    %vm98 = vmand %vm90, %vm96
    %v99 = vsub.f32 1.0, %v69
    %v100 = vsub.f32 1.0, %v70
    %v101 = vmul.f32 %v99, %v99
    %v102 = vmul.f32 %v100, %v100
    %v103 = vsub.f32 0.0, %v101
    %v104 = vsub.f32 0.0, %v102
    %v105 = vadd.f32 %v69, 1e-08
    %v106 = vadd.f32 %v70, 1e-08
    %v107 = vlog2.pop %v105
    %v108 = vmul.f32 %v107, 0.6931472
    %v109 = vlog2.pop %v106
    %v110 = vmul.f32 %v109, 0.6931472
    %v111 = vmul.f32 %v103, %v108
    %v112 = vmul.f32 %v104, %v110
    %v113 = vmul.f32 %v69, %v69
    %v114 = vmul.f32 %v70, %v70
    %v115 = vsub.f32 0.0, %v113
    %v116 = vsub.f32 0.0, %v114
    %v117 = vadd.f32 %v99, 1e-08
    %v118 = vadd.f32 %v100, 1e-08
    %v119 = vlog2.pop %v117
    %v120 = vmul.f32 %v119, 0.6931472
    %v121 = vlog2.pop %v118
    %v122 = vmul.f32 %v121, 0.6931472
    %v123 = vmul.f32 %v115, %v120
    %v124 = vmul.f32 %v116, %v122
    %v125 = vsel %vm93, %v111, 0.0
    %v126 = vsel %vm94, %v112, 0.0
    %v127 = vsel %vm97, %v123, 0.0
    %v128 = vsel %vm98, %v124, 0.0
    %v129 = vsel %vm93, 1.0, 0.0
    %v130 = vsel %vm94, 1.0, 0.0
    %v131 = vld [vmem:[#allocation9] sm:$0xff]
    %v132 = vadd.f32 %v125, %v126
    %v133 = vadd.f32 %v131, %v132
    %134 = vst [vmem:[#allocation9] sm:$0xff] %v133
    %s135 = scalar_lea.vmem [#allocation9], 8
    %v136 = vld [vmem:[%s135] sm:$0xff]
    %v137 = vadd.f32 %v127, %v128
    %v138 = vadd.f32 %v136, %v137
    %139 = vst [vmem:[%s135] sm:$0xff] %v138
    %s140 = scalar_lea.vmem [#allocation9], 16
    %v141 = vld [vmem:[%s140] sm:$0xff]
    %v142 = vadd.f32 %v129, %v130
    %v143 = vadd.f32 %v141, %v142
    %144 = vst [vmem:[%s140] sm:$0xff] %v143
    // Predicated region
    $region22: #{tpu_custom_call.1} parent=1 // pred_check
      _
    $region23: #{tpu_custom_call.1} parent=1 // pred_check_branch
      %146 = sbr.rel (0) target = $region25
    $region24: #{tpu_custom_call.1} parent=1 // pred_region
      %s148 = ssub.s32 384, 384
      %149 = vsyncadd [#allocation6], %s148
      %s150 = sshll.u32 [#allocation9], 4
      %s151 = int_to_ptr.vmem [resolvable:$true] %s150
      %156 = dma.vmem_to_hbm [thread:$0]  %s151, 384, %s3, [#allocation6], 128, 128, 8
    $region25: #{tpu_custom_call.1} parent=1 // pred_fallthru
      _
    // Predicated region
    $region26: #{tpu_custom_call.1} parent=1 // pred_check
      _
    $region27: #{tpu_custom_call.1} parent=1 // pred_check_branch
      %158 = sbr.rel (0) target = $region29
    $region28: #{tpu_custom_call.1} parent=1 // pred_region
      %159 = dma.done [#allocation6], 384
    $region29: #{tpu_custom_call.1} parent=1 // pred_fallthru
      _
    %160 = vsyncpa [#allocation5], 1
    %161 = vsyncpa [#allocation8], 1
    %162 = vsyncpa [#allocation6], 1

</llo_original>
